<compile_context>
chip_gen: v6e
topology: v6e:2x2x1
jax: 0.10.0
libtpu: 0.0.40
codegen_flags: <defaults>
</compile_context>

<pallas_src>
import math
import functools

import jax
import jax.numpy as jnp
from jax.experimental import pallas as pl
from jax.experimental.pallas import tpu as pltpu


def _gelu_new(x):
    # HF "gelu_new" (tanh approximation) used by gated-gelu T5. tanh -> EUP.
    c = math.sqrt(2.0 / math.pi)
    return 0.5 * x * (1.0 + jnp.tanh(c * (x + 0.044715 * x * x * x)))


def _round_up(x, m):
    return ((x + m - 1) // m) * m


def _pick_ff_tile(d_ff, pref):
    """Pick the d_ff slab size: full extent if it fits, else the multiple of 128
    <= pref that minimizes zero padding (preferring larger slabs on ties)."""
    if d_ff <= pref:
        return d_ff
    best_t, best_pad = 128, None
    t = max(128, (pref // 128) * 128)
    while t >= 128:
        pad = _round_up(d_ff, t) - d_ff
        if best_pad is None or pad < best_pad:
            best_t, best_pad = t, pad
        if pad == 0:
            break
        t -= 128
    return best_t


def t5_layer_ff_kernel(x_ref, ln_w_ref, wi0_ref, wi1_ref, wo_ref, o_ref,
                       xn_ref, acc_ref, *, eps):
    # Grid: (row tiles, d_ff slabs); d_ff is the reduction axis (last, "arbitrary").
    k = pl.program_id(1)
    last_k = pl.num_programs(1) - 1

    @pl.when(k == 0)
    def _():
        # --- T5LayerNorm (RMSNorm: no mean subtraction, no bias), f32 math ---
        x = x_ref[...].astype(jnp.float32)
        var = jnp.mean(x * x, axis=-1, keepdims=True)
        xn = x * jax.lax.rsqrt(var + eps)                   # rsqrt -> EUP
        xn = xn * ln_w_ref[...].astype(jnp.float32)          # (1, d_model) broadcast
        # Cache normalized activations in the weights' dtype (bf16 fast path on MXU).
        xn_ref[...] = xn.astype(xn_ref.dtype)

    xn = xn_ref[...]                                          # (tm, d_model)

    # --- T5DenseGatedActDense over this d_ff slab ---
    g = jnp.dot(xn, wi0_ref[...], preferred_element_type=jnp.float32)    # (tm, tk)
    l = jnp.dot(xn, wi1_ref[...], preferred_element_type=jnp.float32)    # (tm, tk)
    h = (_gelu_new(g) * l).astype(wo_ref.dtype)
    partial = jnp.dot(h, wo_ref[...], preferred_element_type=jnp.float32)  # (tm, d_model)

    @pl.when(k == 0)
    def _():
        acc_ref[...] = partial

    @pl.when(k > 0)
    def _():
        acc_ref[...] += partial

    @pl.when(k == last_k)
    def _():
        # --- residual add (dropout == identity in eval) ---
        o_ref[...] = (x_ref[...].astype(jnp.float32) + acc_ref[...]).astype(o_ref.dtype)


def t5_layer_ff(hidden_states, ln_weight, wi0, wi1, wo, *, eps=1e-6,
                tm=256, tk=512):
    """hidden_states: (B, S, d_model). Returns same shape/dtype."""
    B, S, d_model = hidden_states.shape
    d_ff = wi0.shape[1]
    M = B * S

    compute_dtype = wi0.dtype                                # bf16 in production, f32 here
    x_isz = jnp.dtype(hidden_states.dtype).itemsize
    w_isz = jnp.dtype(compute_dtype).itemsize
    ln_isz = jnp.dtype(ln_weight.dtype).itemsize

    # Effective tiles: clamp to the (padded) problem size; keep (8,128) alignment.
    tm_eff = min(tm, _round_up(M, 8))
    tk_eff = _pick_ff_tile(d_ff, tk)

    def _footprint(tm_e, tk_e):
        # Per-step VMEM footprint (double-buffered in/out + weight slabs) + scratch
        # + f32 intermediate headroom.
        return (2 * tm_e * d_model * x_isz                   # x tile (2 bufs)
                + 2 * tm_e * d_model * x_isz                 # out tile (2 bufs)
                + 2 * d_model * ln_isz                       # ln weight
                + 2 * 2 * d_model * tk_e * w_isz             # wi0 + wi1 slabs (2 bufs each)
                + 2 * tk_e * d_model * w_isz                 # wo slab (2 bufs)
                + tm_e * d_model * (w_isz + 4)               # xn cache + f32 accumulator
                + 3 * tm_e * tk_e * 4)                       # g, l, h f32 intermediates

    # Auto-shrink tiles so we fit comfortably under v7x's 64 MiB physical VMEM.
    BUDGET = 48 * 1024 * 1024
    while _footprint(tm_eff, tk_eff) > BUDGET and tk_eff > 256:
        tk_eff = max(256, ((tk_eff // 2) + 127) // 128 * 128)
    while _footprint(tm_eff, tk_eff) > BUDGET and tm_eff > 8:
        tm_eff = max(8, ((tm_eff // 2) + 7) // 8 * 8)

    M_pad = _round_up(M, tm_eff)
    F_pad = _round_up(d_ff, tk_eff)

    x2d = hidden_states.reshape(M, d_model)
    if M_pad != M:
        x2d = jnp.pad(x2d, ((0, M_pad - M), (0, 0)))         # zero rows -> zero output rows
    if F_pad != d_ff:
        # gelu_new(0) * 0 == 0 and padded wo rows are 0, so padding is exact.
        wi0 = jnp.pad(wi0, ((0, 0), (0, F_pad - d_ff)))
        wi1 = jnp.pad(wi1, ((0, 0), (0, F_pad - d_ff)))
        wo = jnp.pad(wo, ((0, F_pad - d_ff), (0, 0)))
    ln_w2d = ln_weight.reshape(1, d_model)

    per_step = _footprint(tm_eff, tk_eff)
    vmem_limit = min(max(int(per_step * 1.3), 32 * 1024 * 1024), 56 * 1024 * 1024)

    n_row_tiles = M_pad // tm_eff
    cost = pl.CostEstimate(
        flops=6 * M_pad * d_model * F_pad,                   # 3 matmuls, 2*MNK each
        transcendentals=M_pad * F_pad,                       # tanh in gelu_new
        bytes_accessed=int(2 * M_pad * d_model * x_isz
                           + n_row_tiles * 3 * d_model * F_pad * w_isz
                           + d_model * ln_isz),
    )

    kernel = functools.partial(t5_layer_ff_kernel, eps=eps)

    out2d = pl.pallas_call(
        kernel,
        out_shape=jax.ShapeDtypeStruct((M_pad, d_model), hidden_states.dtype),
        grid_spec=pltpu.PrefetchScalarGridSpec(
            num_scalar_prefetch=0,
            grid=(n_row_tiles, F_pad // tk_eff),
            in_specs=[
                pl.BlockSpec((tm_eff, d_model), lambda i, k: (i, 0)),    # x tile
                pl.BlockSpec((1, d_model), lambda i, k: (0, 0)),         # layer-norm weight
                pl.BlockSpec((d_model, tk_eff), lambda i, k: (0, k)),    # wi_0 slab
                pl.BlockSpec((d_model, tk_eff), lambda i, k: (0, k)),    # wi_1 slab
                pl.BlockSpec((tk_eff, d_model), lambda i, k: (k, 0)),    # wo slab
            ],
            out_specs=pl.BlockSpec((tm_eff, d_model), lambda i, k: (i, 0)),
            scratch_shapes=[
                pltpu.VMEM((tm_eff, d_model), compute_dtype),            # cached RMSNorm(x)
                pltpu.VMEM((tm_eff, d_model), jnp.float32),              # f32 accumulator
            ],
        ),
        compiler_params=pltpu.CompilerParams(
            dimension_semantics=("parallel", "arbitrary"),
            vmem_limit_bytes=vmem_limit,
        ),
        cost_estimate=cost,
    )(x2d, ln_w2d, wi0, wi1, wo)

    if M_pad != M:
        out2d = out2d[:M]
    return out2d.reshape(B, S, d_model)


def reference(hidden_states, ln_weight, wi0, wi1, wo, eps=1e-6):
    x = hidden_states.astype(jnp.float32)
    var = jnp.mean(x * x, axis=-1, keepdims=True)
    xn = x * jax.lax.rsqrt(var + eps) * ln_weight
    h = _gelu_new(xn @ wi0) * (xn @ wi1)
    return (x + h @ wo).astype(hidden_states.dtype)


if __name__ == "__main__":
    def make_inputs(B, S, d_model, d_ff, key):
        k_x, k_w0, k_w1, k_wo, k_ln = jax.random.split(key, 5)
        hidden_states = jax.random.normal(k_x, (B, S, d_model), dtype=jnp.float32)
        wi0 = jax.random.normal(k_w0, (d_model, d_ff), dtype=jnp.float32) * 0.05
        wi1 = jax.random.normal(k_w1, (d_model, d_ff), dtype=jnp.float32) * 0.05
        wo = jax.random.normal(k_wo, (d_ff, d_model), dtype=jnp.float32) * 0.05
        ln_weight = jnp.ones((d_model,), dtype=jnp.float32) + 0.1 * jax.random.normal(
            k_ln, (d_model,), dtype=jnp.float32)
        return hidden_states, ln_weight, wi0, wi1, wo

    # Case 1: small shapes consistent with the module: batch=2, seq=8, d_model=32, d_ff=64.
    args = make_inputs(2, 8, 32, 64, jax.random.PRNGKey(0))
    out = jax.block_until_ready(t5_layer_ff(*args))
    ref = reference(*args)
    assert out.shape == args[0].shape and out.dtype == args[0].dtype
    assert jnp.allclose(out, ref, atol=1e-4, rtol=1e-4), "mismatch vs reference (case 1)"

    # Case 2: exercises the M-padding path (B*S not a multiple of 8).
    args2 = make_inputs(2, 9, 32, 64, jax.random.PRNGKey(1))
    out2 = jax.block_until_ready(t5_layer_ff(*args2))
    ref2 = reference(*args2)
    assert jnp.allclose(out2, ref2, atol=1e-4, rtol=1e-4), "mismatch vs reference (case 2)"

    # Case 3: exercises the streamed d_ff reduction (several k slabs) with padding.
    args3 = make_inputs(2, 16, 128, 384, jax.random.PRNGKey(2))
    out3 = jax.block_until_ready(t5_layer_ff(*args3, tk=256))
    ref3 = reference(*args3)
    assert jnp.allclose(out3, ref3, atol=1e-4, rtol=1e-4), "mismatch vs reference (case 3)"

    print("KERNEL_OK")
</pallas_src>

<mosaic_0001>
module attributes {stable_mosaic.version = 11 : i64} {
  func.func @t5_layer_ff_kernel(%arg0: i32, %arg1: i32, %arg2: memref<16x32xf32, #tpu.memory_space<vmem>>, %arg3: memref<1x32xf32, #tpu.memory_space<vmem>>, %arg4: memref<32x64xf32, #tpu.memory_space<vmem>>, %arg5: memref<32x64xf32, #tpu.memory_space<vmem>>, %arg6: memref<64x32xf32, #tpu.memory_space<vmem>>, %arg7: memref<16x32xf32, #tpu.memory_space<vmem>>, %arg8: memref<16x32xf32, #tpu.memory_space<vmem>>, %arg9: memref<16x32xf32, #tpu.memory_space<vmem>>) attributes {dimension_semantics = [#tpu.dimension_semantics<parallel>, #tpu.dimension_semantics<arbitrary>], iteration_bounds = array<i64: 1, 1>, scalar_prefetch = 0 : i64, scratch_operands = 2 : i64, tpu.core_type = #tpu.core_type<tc>, window_params = [{transform_indices = @transform_0, window_bounds = array<i64: 16, 32>}, {pipeline_mode = #tpu.pipeline_mode<synchronous>, transform_indices = @transform_1, window_bounds = array<i64: 1, 32>}, {transform_indices = @transform_2, window_bounds = array<i64: 32, 64>}, {transform_indices = @transform_3, window_bounds = array<i64: 32, 64>}, {transform_indices = @transform_4, window_bounds = array<i64: 64, 32>}, {transform_indices = @transform_5, window_bounds = array<i64: 16, 32>}]} {
    %c0_i32 = arith.constant 0 : i32
    %0 = arith.cmpi eq, %arg1, %c0_i32 : i32
    %1 = arith.extui %0 : i1 to i32
    %c0_i32_0 = arith.constant 0 : i32
    %2 = arith.cmpi ne, %1, %c0_i32_0 : i32
    scf.if %2 {
      %c0_20 = arith.constant 0 : index
      %c0_21 = arith.constant 0 : index
      %33 = vector.load %arg2[%c0_20, %c0_21] : memref<16x32xf32, #tpu.memory_space<vmem>>, vector<16x32xf32>
      %34 = arith.mulf %33, %33 : vector<16x32xf32>
      %cst_22 = arith.constant dense<0.000000e+00> : vector<16xf32>
      %35 = vector.multi_reduction <add>, %34, %cst_22 [1] : vector<16x32xf32> to vector<16xf32>
      %36 = vector.shape_cast %35 : vector<16xf32> to vector<16x1xf32>
      %cst_23 = arith.constant 3.200000e+01 : f32
      %37 = vector.broadcast %cst_23 : f32 to vector<16x1xf32>
      %38 = arith.divf %36, %37 : vector<16x1xf32>
      %cst_24 = arith.constant 9.99999997E-7 : f32
      %39 = vector.broadcast %cst_24 : f32 to vector<16x1xf32>
      %40 = arith.addf %38, %39 : vector<16x1xf32>
      %41 = math.rsqrt %40 : vector<16x1xf32>
      %42 = vector.broadcast %41 : vector<16x1xf32> to vector<16x32xf32>
      %43 = arith.mulf %33, %42 : vector<16x32xf32>
      %c0_25 = arith.constant 0 : index
      %c0_26 = arith.constant 0 : index
      %44 = vector.load %arg3[%c0_25, %c0_26] : memref<1x32xf32, #tpu.memory_space<vmem>>, vector<1x32xf32>
      %45 = vector.broadcast %44 : vector<1x32xf32> to vector<16x32xf32>
      %46 = arith.mulf %43, %45 : vector<16x32xf32>
      %c0_27 = arith.constant 0 : index
      %c0_28 = arith.constant 0 : index
      %47 = vector.load %arg8[%c0_27, %c0_28] : memref<16x32xf32, #tpu.memory_space<vmem>>, vector<16x32xf32>
      tpu.vector_store %arg8[%c0_27, %c0_28], %46 {strides = array<i32>} : memref<16x32xf32, #tpu.memory_space<vmem>>, vector<16x32xf32>,
    } else {
    }
    %c0 = arith.constant 0 : index
    %c0_1 = arith.constant 0 : index
    %3 = vector.load %arg8[%c0, %c0_1] : memref<16x32xf32, #tpu.memory_space<vmem>>, vector<16x32xf32>
    %c0_2 = arith.constant 0 : index
    %c0_3 = arith.constant 0 : index
    %4 = vector.load %arg4[%c0_2, %c0_3] : memref<32x64xf32, #tpu.memory_space<vmem>>, vector<32x64xf32>
    %cst = arith.constant dense<0.000000e+00> : vector<16x64xf32>
    %5 = tpu.matmul %3, %4, %cst {dimension_numbers = #tpu.dot_dimension_numbers<[1], [0], [0], [1], [0, 0, 1, 1], [], []>} : vector<16x32xf32>, vector<32x64xf32>, vector<16x64xf32> -> vector<16x64xf32>
    %c0_4 = arith.constant 0 : index
    %c0_5 = arith.constant 0 : index
    %6 = vector.load %arg5[%c0_4, %c0_5] : memref<32x64xf32, #tpu.memory_space<vmem>>, vector<32x64xf32>
    %cst_6 = arith.constant dense<0.000000e+00> : vector<16x64xf32>
    %7 = tpu.matmul %3, %6, %cst_6 {dimension_numbers = #tpu.dot_dimension_numbers<[1], [0], [0], [1], [0, 0, 1, 1], [], []>} : vector<16x32xf32>, vector<32x64xf32>, vector<16x64xf32> -> vector<16x64xf32>
    %cst_7 = arith.constant 5.000000e-01 : f32
    %8 = vector.broadcast %cst_7 : f32 to vector<16x64xf32>
    %9 = arith.mulf %8, %5 : vector<16x64xf32>
    %cst_8 = arith.constant 4.471500e-02 : f32
    %10 = vector.broadcast %cst_8 : f32 to vector<16x64xf32>
    %11 = arith.mulf %10, %5 : vector<16x64xf32>
    %12 = arith.mulf %11, %5 : vector<16x64xf32>
    %13 = arith.mulf %12, %5 : vector<16x64xf32>
    %14 = arith.addf %5, %13 : vector<16x64xf32>
    %cst_9 = arith.constant 0.797884583 : f32
    %15 = vector.broadcast %cst_9 : f32 to vector<16x64xf32>
    %16 = arith.mulf %15, %14 : vector<16x64xf32>
    %17 = math.tanh %16 : vector<16x64xf32>
    %cst_10 = arith.constant 1.000000e+00 : f32
    %18 = vector.broadcast %cst_10 : f32 to vector<16x64xf32>
    %19 = arith.addf %18, %17 : vector<16x64xf32>
    %20 = arith.mulf %9, %19 : vector<16x64xf32>
    %21 = arith.mulf %20, %7 : vector<16x64xf32>
    %c0_11 = arith.constant 0 : index
    %c0_12 = arith.constant 0 : index
    %22 = vector.load %arg6[%c0_11, %c0_12] : memref<64x32xf32, #tpu.memory_space<vmem>>, vector<64x32xf32>
    %cst_13 = arith.constant dense<0.000000e+00> : vector<16x32xf32>
    %23 = tpu.matmul %21, %22, %cst_13 {dimension_numbers = #tpu.dot_dimension_numbers<[1], [0], [0], [1], [0, 0, 1, 1], [], []>} : vector<16x64xf32>, vector<64x32xf32>, vector<16x32xf32> -> vector<16x32xf32>
    %c0_i32_14 = arith.constant 0 : i32
    %24 = arith.cmpi eq, %arg1, %c0_i32_14 : i32
    %25 = arith.extui %24 : i1 to i32
    %c0_i32_15 = arith.constant 0 : i32
    %26 = arith.cmpi ne, %25, %c0_i32_15 : i32
    scf.if %26 {
      %c0_20 = arith.constant 0 : index
      %c0_21 = arith.constant 0 : index
      %33 = vector.load %arg9[%c0_20, %c0_21] : memref<16x32xf32, #tpu.memory_space<vmem>>, vector<16x32xf32>
      tpu.vector_store %arg9[%c0_20, %c0_21], %23 {strides = array<i32>} : memref<16x32xf32, #tpu.memory_space<vmem>>, vector<16x32xf32>,
    } else {
    }
    %c0_i32_16 = arith.constant 0 : i32
    %27 = arith.cmpi sgt, %arg1, %c0_i32_16 : i32
    %28 = arith.extui %27 : i1 to i32
    %c0_i32_17 = arith.constant 0 : i32
    %29 = arith.cmpi ne, %28, %c0_i32_17 : i32
    scf.if %29 {
      %c0_20 = arith.constant 0 : index
      %c0_21 = arith.constant 0 : index
      %33 = vector.load %arg9[%c0_20, %c0_21] : memref<16x32xf32, #tpu.memory_space<vmem>>, vector<16x32xf32>
      %34 = arith.addf %33, %23 : vector<16x32xf32>
      %c0_22 = arith.constant 0 : index
      %c0_23 = arith.constant 0 : index
      %35 = vector.load %arg9[%c0_22, %c0_23] : memref<16x32xf32, #tpu.memory_space<vmem>>, vector<16x32xf32>
      tpu.vector_store %arg9[%c0_22, %c0_23], %34 {strides = array<i32>} : memref<16x32xf32, #tpu.memory_space<vmem>>, vector<16x32xf32>,
    } else {
    }
    %c0_i32_18 = arith.constant 0 : i32
    %30 = arith.cmpi eq, %arg1, %c0_i32_18 : i32
    %31 = arith.extui %30 : i1 to i32
    %c0_i32_19 = arith.constant 0 : i32
    %32 = arith.cmpi ne, %31, %c0_i32_19 : i32
    scf.if %32 {
      %c0_20 = arith.constant 0 : index
      %c0_21 = arith.constant 0 : index
      %33 = vector.load %arg2[%c0_20, %c0_21] : memref<16x32xf32, #tpu.memory_space<vmem>>, vector<16x32xf32>
      %c0_22 = arith.constant 0 : index
      %c0_23 = arith.constant 0 : index
      %34 = vector.load %arg9[%c0_22, %c0_23] : memref<16x32xf32, #tpu.memory_space<vmem>>, vector<16x32xf32>
      %35 = arith.addf %33, %34 : vector<16x32xf32>
      %c0_24 = arith.constant 0 : index
      %c0_25 = arith.constant 0 : index
      %36 = vector.load %arg7[%c0_24, %c0_25] : memref<16x32xf32, #tpu.memory_space<vmem>>, vector<16x32xf32>
      tpu.vector_store %arg7[%c0_24, %c0_25], %35 {strides = array<i32>} : memref<16x32xf32, #tpu.memory_space<vmem>>, vector<16x32xf32>,
    } else {
    }
    return
  }
  func.func @transform_0(%arg0: i32, %arg1: i32) -> (i32, i32) {
    %c0_i32 = arith.constant 0 : i32
    %c0_i32_0 = arith.constant 0 : i32
    return %arg0, %c0_i32 : i32, i32
  }
  func.func @transform_1(%arg0: i32, %arg1: i32) -> (i32, i32) {
    %c0_i32 = arith.constant 0 : i32
    %c0_i32_0 = arith.constant 0 : i32
    %c0_i32_1 = arith.constant 0 : i32
    return %c0_i32, %c0_i32_0 : i32, i32
  }
  func.func @transform_2(%arg0: i32, %arg1: i32) -> (i32, i32) {
    %c0_i32 = arith.constant 0 : i32
    %c0_i32_0 = arith.constant 0 : i32
    return %c0_i32, %arg1 : i32, i32
  }
  func.func @transform_3(%arg0: i32, %arg1: i32) -> (i32, i32) {
    %c0_i32 = arith.constant 0 : i32
    %c0_i32_0 = arith.constant 0 : i32
    return %c0_i32, %arg1 : i32, i32
  }
  func.func @transform_4(%arg0: i32, %arg1: i32) -> (i32, i32) {
    %c0_i32 = arith.constant 0 : i32
    %c0_i32_0 = arith.constant 0 : i32
    return %arg1, %c0_i32 : i32, i32
  }
  func.func @transform_5(%arg0: i32, %arg1: i32) -> (i32, i32) {
    %c0_i32 = arith.constant 0 : i32
    %c0_i32_0 = arith.constant 0 : i32
    return %arg0, %c0_i32 : i32, i32
  }
}

</mosaic_0001>

<llo_original>
// kernel: tpu_custom_call.1
$region0: #{tpu_custom_call.1}
  #allocation0 [shape = 'u32[]', space=smem, size = 0x4, offset = 0x4, fixed_abs, tag = 'smem constant byte address 0x4 - core index']
  #allocation1 [shape = 'u32[144,128]{1,0:T(1,128)}', space=vmem, size = 0x12000, scoped, tag = 'internal scratch']
  #allocation2 [shape = 'f32[16,32]{1,0:T(8,128)}', space=vmem, size = 0x2000, scoped, tag = 'scratch operand']
  #allocation3 [shape = 'f32[16,32]{1,0:T(8,128)}', space=vmem, size = 0x2000, scoped, tag = 'scratch operand']
  %s0 = inlined_call_operand.vmem [shape: f32[16,32], index: 0, kind: input, shape index: {}]
  %s1 = inlined_call_operand.vmem [shape: f32[1,32], index: 1, kind: input, shape index: {}]
  %s2 = inlined_call_operand.vmem [shape: f32[32,64], index: 2, kind: input, shape index: {}]
  %s3 = inlined_call_operand.vmem [shape: f32[32,64], index: 3, kind: input, shape index: {}]
  %s4 = inlined_call_operand.vmem [shape: f32[64,32], index: 4, kind: input, shape index: {}]
  %s5 = inlined_call_operand.hbm [shape: f32[16,32], index: 5, kind: output, shape index: {}]
  %s6 = sld [smem:[#allocation0]]
  $region46: #{tpu_custom_call.1} parent=0
    _
  %s8 = ssub.s32 1, %s6
  %s9 = scalar_select 0, %s8, %s6
  $region1: #{tpu_custom_call.1} parent=0
    #allocation4 [shape = 'u8[8192]{0}', space=vmem, size = 0x2000, scoped, tag = 'output window, operand 0, single buffered']
    #allocation5 [shape = 's32[1]{0}', space=sflag, size = 0x4, scoped, tag = 'scoped memory for tpu_custom_call.1']
    %10 = vsyncpa [#allocation5], 0
    // Predicated region
    $region2: #{tpu_custom_call.1} parent=1 // pred_check
      _
    $region3: #{tpu_custom_call.1} parent=1 // pred_check_branch
      %12 = sbr.rel (0) target = $region5
    $region4: #{tpu_custom_call.1} parent=1 // pred_region
      _
    $region5: #{tpu_custom_call.1} parent=1 // pred_fallthru
      _
    // Predicated region
    $region6: #{tpu_custom_call.1} parent=1 // pred_check
      _
    $region7: #{tpu_custom_call.1} parent=1 // pred_check_branch
      %14 = sbr.rel (0) target = $region9
    $region8: #{tpu_custom_call.1} parent=1 // pred_region
      _
    $region9: #{tpu_custom_call.1} parent=1 // pred_fallthru
      _
    // Predicated region
    $region10: #{tpu_custom_call.1} parent=1 // pred_check
      _
    $region11: #{tpu_custom_call.1} parent=1 // pred_check_branch
      %16 = sbr.rel (0) target = $region13
    $region12: #{tpu_custom_call.1} parent=1 // pred_region
      _
    $region13: #{tpu_custom_call.1} parent=1 // pred_fallthru
      _
    // Predicated region
    $region14: #{tpu_custom_call.1} parent=1 // pred_check
      _
    $region15: #{tpu_custom_call.1} parent=1 // pred_check_branch
      %18 = sbr.rel (0) target = $region17
    $region16: #{tpu_custom_call.1} parent=1 // pred_region
      _
    $region17: #{tpu_custom_call.1} parent=1 // pred_fallthru
      _
    // Predicated region
    $region18: #{tpu_custom_call.1} parent=1 // pred_check
      _
    $region19: #{tpu_custom_call.1} parent=1 // pred_check_branch
      %20 = sbr.rel (0) target = $region21
    $region20: #{tpu_custom_call.1} parent=1 // pred_region
      _
    $region21: #{tpu_custom_call.1} parent=1 // pred_fallthru
      _
    %p21 = scmp.eq.s32.totalorder 0, 0
    // Predicated region
    $region22: #{tpu_custom_call.1} parent=1 // pred_check
      %p22 = pneg %p21
    $region23: #{tpu_custom_call.1} parent=1 // pred_check_branch
      %24 = sbr.rel (%p22) target = $region25
    $region24: #{tpu_custom_call.1} parent=1 // pred_region
      %v25 = vld [vmem:[%s0] sm:$0xff]
      %v26 = vld [vmem:[%s0 + $0x8] sm:$0xff]
      %v27 = vmul.f32 %v25, %v25
      %v28 = vmul.f32 %v26, %v26
      %vm29 = vcmask 261120
      %v30 = vsel %vm29, %v27, 0.0
      %31 = vadd.xlane.f32.xlu0 %v30
      %v32 = vpop.xlane.xlu0 %31
      %v33 = vsel %vm29, %v28, 0.0
      %34 = vadd.xlane.f32.xlu0 %v33
      %v35 = vpop.xlane.xlu0 %34
      %v36 = vrcp.pop 32.0
      %v37 = vmul.f32 %v32, %v36
      %v38 = vmul.f32 %v35, %v36
      %v39 = vadd.f32 %v37, 1e-06
      %v40 = vadd.f32 %v38, 1e-06
      %v41 = vrsqrt.pop %v39
      %v42 = vrsqrt.pop %v40
      %v43 = vmul.f32 %v25, %v41
      %v44 = vmul.f32 %v26, %v42
      %v45 = vld [vmem:[%s1] sm:$0x1]
      %v47 = vlaneseq
      %v48 = vshrl.u32 %v47, 7
      %v49 = vsub.s32 0, %v48
      %v50 = vrot.slane %v45, %v49
      %v52 = vmul.f32 %v43, %v50
      %v53 = vmul.f32 %v44, %v50
      %54 = vst.msk [vmem:[#allocation2] sm:$0xff] %vm29, %v52
      %55 = vst.msk [vmem:[#allocation2 + $0x8] sm:$0xff] %vm29, %v53
    $region25: #{tpu_custom_call.1} parent=1 // pred_fallthru
      _
    %v56 = vld [vmem:[#allocation2] sm:$0xff]
    %v57 = vld [vmem:[#allocation2 + $0x8] sm:$0xff]
    %v58 = vld [vmem:[%s2] sm:$0xff]
    %v59 = vld [vmem:[%s2 + $0x8] sm:$0xff]
    %v60 = vld [vmem:[%s2 + $0x10] sm:$0xff]
    %v61 = vld [vmem:[%s2 + $0x18] sm:$0xff]
    %vm62 = vcmask 261120
    %v64 = vsel %vm62, %v56, 0
    %v67 = vsel %vm62, %v57, 0
    %69 = vmatprep.subr.mxu0 0.0
    %70 = vmatpush1.msra.mxu0 0.0
    %71 = vmatprep.subr.mxu0 0.0
    %72 = vmatpush1.msra.mxu0 0.0
    %73 = vmatprep.subr.mxu0 0.0
    %74 = vmatpush1.msra.mxu0 0.0
    %75 = vmatprep.subr.mxu0 0.0
    %76 = vmatpush1.msra.mxu0 0.0
    %77 = vmatprep.subr.mxu0 0.0
    %78 = vmatpush1.msra.mxu0 0.0
    %79 = vmatprep.subr.mxu0 0.0
    %80 = vmatpush1.msra.mxu0 0.0
    %81 = vmatprep.subr.mxu0 0.0
    %82 = vmatpush1.msra.mxu0 0.0
    %83 = vmatprep.subr.mxu0 0.0
    %84 = vmatpush1.msra.mxu0 0.0
    %85 = vmatprep.subr.mxu0 0.0
    %86 = vmatpush1.msra.mxu0 0.0
    %87 = vmatprep.subr.mxu0 0.0
    %88 = vmatpush1.msra.mxu0 0.0
    %89 = vmatprep.subr.mxu0 0.0
    %90 = vmatpush1.msra.mxu0 0.0
    %91 = vmatprep.subr.mxu0 0.0
    %92 = vmatpush1.msra.mxu0 0.0
    %93 = vmatprep.subr.mxu0 0.0
    %94 = vmatpush1.msra.mxu0 %v61
    %95 = vmatprep.subr.mxu0 0.0
    %96 = vmatpush1.msra.mxu0 %v60
    %97 = vmatprep.subr.mxu0 0.0
    %98 = vmatpush1.msra.mxu0 %v59
    %99 = vmatprep.subr.mxu0 0.0
    %100 = vmatpush1.msra.mxu0 %v58
    %101 = vmatprep.subr.mxu0 0.0
    %102 = vmatpush2.msra.mxu0 0.0
    %103 = vmatprep.subr.mxu0 0.0
    %104 = vmatpush2.msra.mxu0 0.0
    %105 = vmatprep.subr.mxu0 0.0
    %106 = vmatpush2.msra.mxu0 0.0
    %107 = vmatprep.subr.mxu0 0.0
    %108 = vmatpush2.msra.mxu0 0.0
    %109 = vmatprep.subr.mxu0 0.0
    %110 = vmatpush2.msra.mxu0 0.0
    %111 = vmatprep.subr.mxu0 0.0
    %112 = vmatpush2.msra.mxu0 0.0
    %113 = vmatprep.subr.mxu0 0.0
    %114 = vmatpush2.msra.mxu0 0.0
    %115 = vmatprep.subr.mxu0 0.0
    %116 = vmatpush2.msra.mxu0 0.0
    %117 = vmatprep.subr.mxu0 0.0
    %118 = vmatpush2.msra.mxu0 0.0
    %119 = vmatprep.subr.mxu0 0.0
    %120 = vmatpush2.msra.mxu0 0.0
    %121 = vmatprep.subr.mxu0 0.0
    %122 = vmatpush2.msra.mxu0 0.0
    %123 = vmatprep.subr.mxu0 0.0
    %124 = vmatpush2.msra.mxu0 0.0
    %125 = vmatprep.subr.mxu0 0.0
    %126 = vmatpush2.msra.mxu0 0.0
    %127 = vmatprep.subr.mxu0 0.0
    %128 = vmatpush2.msra.mxu0 0.0
    %129 = vmatprep.subr.mxu0 0.0
    %130 = vmatpush2.msra.mxu0 0.0
    %131 = vmatprep.subr.mxu0 0.0
    %132 = vmatpush2.msra.mxu0 0.0
    %133 = vmatprep.mubr.f32.mxu0 0.0
    %134 = vmatmul.mubr.f32.gmra.mxu0 %v64
    %v135 = vpop.f32.mrf.mxu0
    %v136 = vadd.f32 0.0, %v135
    %v137 = vpop.f32.mrf.mxu0
    %138 = vmatprep.mubr.f32.mxu0 0.0
    %139 = vmatmul.mubr.f32.gmra.mxu0 %v67
    %v140 = vpop.f32.mrf.mxu0
    %v141 = vadd.f32 0.0, %v140
    %v142 = vpop.f32.mrf.mxu0
    %143 = vdwg.mxu0
    %v144 = vld [vmem:[%s3] sm:$0xff]
    %v145 = vld [vmem:[%s3 + $0x8] sm:$0xff]
    %v146 = vld [vmem:[%s3 + $0x10] sm:$0xff]
    %v147 = vld [vmem:[%s3 + $0x18] sm:$0xff]
    %148 = vmatprep.subr.mxu0 0.0
    %149 = vmatpush1.msra.mxu0 0.0
    %150 = vmatprep.subr.mxu0 0.0
    %151 = vmatpush1.msra.mxu0 0.0
    %152 = vmatprep.subr.mxu0 0.0
    %153 = vmatpush1.msra.mxu0 0.0
    %154 = vmatprep.subr.mxu0 0.0
    %155 = vmatpush1.msra.mxu0 0.0
    %156 = vmatprep.subr.mxu0 0.0
    %157 = vmatpush1.msra.mxu0 0.0
    %158 = vmatprep.subr.mxu0 0.0
    %159 = vmatpush1.msra.mxu0 0.0
    %160 = vmatprep.subr.mxu0 0.0
    %161 = vmatpush1.msra.mxu0 0.0
    %162 = vmatprep.subr.mxu0 0.0
    %163 = vmatpush1.msra.mxu0 0.0
    %164 = vmatprep.subr.mxu0 0.0
    %165 = vmatpush1.msra.mxu0 0.0
    %166 = vmatprep.subr.mxu0 0.0
    %167 = vmatpush1.msra.mxu0 0.0
    %168 = vmatprep.subr.mxu0 0.0
    %169 = vmatpush1.msra.mxu0 0.0
    %170 = vmatprep.subr.mxu0 0.0
    %171 = vmatpush1.msra.mxu0 0.0
    %172 = vmatprep.subr.mxu0 0.0
    %173 = vmatpush1.msra.mxu0 %v147
    %174 = vmatprep.subr.mxu0 0.0
    %175 = vmatpush1.msra.mxu0 %v146
    %176 = vmatprep.subr.mxu0 0.0
    %177 = vmatpush1.msra.mxu0 %v145
    %178 = vmatprep.subr.mxu0 0.0
    %179 = vmatpush1.msra.mxu0 %v144
    %180 = vmatprep.subr.mxu0 0.0
    %181 = vmatpush2.msra.mxu0 0.0
    %182 = vmatprep.subr.mxu0 0.0
    %183 = vmatpush2.msra.mxu0 0.0
    %184 = vmatprep.subr.mxu0 0.0
    %185 = vmatpush2.msra.mxu0 0.0
    %186 = vmatprep.subr.mxu0 0.0
    %187 = vmatpush2.msra.mxu0 0.0
    %188 = vmatprep.subr.mxu0 0.0
    %189 = vmatpush2.msra.mxu0 0.0
    %190 = vmatprep.subr.mxu0 0.0
    %191 = vmatpush2.msra.mxu0 0.0
    %192 = vmatprep.subr.mxu0 0.0
    %193 = vmatpush2.msra.mxu0 0.0
    %194 = vmatprep.subr.mxu0 0.0
    %195 = vmatpush2.msra.mxu0 0.0
    %196 = vmatprep.subr.mxu0 0.0
    %197 = vmatpush2.msra.mxu0 0.0
    %198 = vmatprep.subr.mxu0 0.0
    %199 = vmatpush2.msra.mxu0 0.0
    %200 = vmatprep.subr.mxu0 0.0
    %201 = vmatpush2.msra.mxu0 0.0
    %202 = vmatprep.subr.mxu0 0.0
    %203 = vmatpush2.msra.mxu0 0.0
    %204 = vmatprep.subr.mxu0 0.0
    %205 = vmatpush2.msra.mxu0 0.0
    %206 = vmatprep.subr.mxu0 0.0
    %207 = vmatpush2.msra.mxu0 0.0
    %208 = vmatprep.subr.mxu0 0.0
    %209 = vmatpush2.msra.mxu0 0.0
    %210 = vmatprep.subr.mxu0 0.0
    %211 = vmatpush2.msra.mxu0 0.0
    %212 = vmatprep.mubr.f32.mxu0 0.0
    %213 = vmatmul.mubr.f32.gmra.mxu0 %v64
    %v214 = vpop.f32.mrf.mxu0
    %v215 = vadd.f32 0.0, %v214
    %v216 = vpop.f32.mrf.mxu0
    %217 = vmatprep.mubr.f32.mxu0 0.0
    %218 = vmatmul.mubr.f32.gmra.mxu0 %v67
    %v219 = vpop.f32.mrf.mxu0
    %v220 = vadd.f32 0.0, %v219
    %v221 = vpop.f32.mrf.mxu0
    %222 = vdwg.mxu0
    %v223 = vmul.f32 %v136, 0.5
    %v224 = vmul.f32 %v141, 0.5
    %v225 = vmul.f32 %v136, 0.044715
    %v226 = vmul.f32 %v141, 0.044715
    %v227 = vmul.f32 %v225, %v136
    %v228 = vmul.f32 %v226, %v141
    %v229 = vmul.f32 %v227, %v136
    %v230 = vmul.f32 %v228, %v141
    %v231 = vadd.f32 %v136, %v229
    %v232 = vadd.f32 %v141, %v230
    %v233 = vmul.f32 %v231, 0.7978846
    %v234 = vmul.f32 %v232, 0.7978846
    %v235 = vtanh.pop %v233
    %v236 = vtanh.pop %v234
    %v237 = vadd.f32 %v235, 1.0
    %v238 = vadd.f32 %v236, 1.0
    %v239 = vmul.f32 %v223, %v237
    %v240 = vmul.f32 %v224, %v238
    %v241 = vmul.f32 %v239, %v215
    %v242 = vmul.f32 %v240, %v220
    %v243 = vld [vmem:[%s4] sm:$0xff]
    %v244 = vld [vmem:[%s4 + $0x8] sm:$0xff]
    %v245 = vld [vmem:[%s4 + $0x10] sm:$0xff]
    %v246 = vld [vmem:[%s4 + $0x18] sm:$0xff]
    %v247 = vld [vmem:[%s4 + $0x20] sm:$0xff]
    %v248 = vld [vmem:[%s4 + $0x28] sm:$0xff]
    %v249 = vld [vmem:[%s4 + $0x30] sm:$0xff]
    %v250 = vld [vmem:[%s4 + $0x38] sm:$0xff]
    %vm251 = vcmask 523264
    %v253 = vsel %vm251, %v241, 0
    %v256 = vsel %vm251, %v242, 0
    %258 = vmatprep.subr.mxu0 0.0
    %259 = vmatpush1.msra.mxu0 0.0
    %260 = vmatprep.subr.mxu0 0.0
    %261 = vmatpush1.msra.mxu0 0.0
    %262 = vmatprep.subr.mxu0 0.0
    %263 = vmatpush1.msra.mxu0 0.0
    %264 = vmatprep.subr.mxu0 0.0
    %265 = vmatpush1.msra.mxu0 0.0
    %266 = vmatprep.subr.mxu0 0.0
    %267 = vmatpush1.msra.mxu0 0.0
    %268 = vmatprep.subr.mxu0 0.0
    %269 = vmatpush1.msra.mxu0 0.0
    %270 = vmatprep.subr.mxu0 0.0
    %271 = vmatpush1.msra.mxu0 0.0
    %272 = vmatprep.subr.mxu0 0.0
    %273 = vmatpush1.msra.mxu0 0.0
    %274 = vmatprep.subr.mxu0 0.0
    %275 = vmatpush1.msra.mxu0 %v250
    %276 = vmatprep.subr.mxu0 0.0
    %277 = vmatpush1.msra.mxu0 %v249
    %278 = vmatprep.subr.mxu0 0.0
    %279 = vmatpush1.msra.mxu0 %v248
    %280 = vmatprep.subr.mxu0 0.0
    %281 = vmatpush1.msra.mxu0 %v247
    %282 = vmatprep.subr.mxu0 0.0
    %283 = vmatpush1.msra.mxu0 %v246
    %284 = vmatprep.subr.mxu0 0.0
    %285 = vmatpush1.msra.mxu0 %v245
    %286 = vmatprep.subr.mxu0 0.0
    %287 = vmatpush1.msra.mxu0 %v244
    %288 = vmatprep.subr.mxu0 0.0
    %289 = vmatpush1.msra.mxu0 %v243
    %290 = vmatprep.subr.mxu0 0.0
    %291 = vmatpush2.msra.mxu0 0.0
    %292 = vmatprep.subr.mxu0 0.0
    %293 = vmatpush2.msra.mxu0 0.0
    %294 = vmatprep.subr.mxu0 0.0
    %295 = vmatpush2.msra.mxu0 0.0
    %296 = vmatprep.subr.mxu0 0.0
    %297 = vmatpush2.msra.mxu0 0.0
    %298 = vmatprep.subr.mxu0 0.0
    %299 = vmatpush2.msra.mxu0 0.0
    %300 = vmatprep.subr.mxu0 0.0
    %301 = vmatpush2.msra.mxu0 0.0
    %302 = vmatprep.subr.mxu0 0.0
    %303 = vmatpush2.msra.mxu0 0.0
    %304 = vmatprep.subr.mxu0 0.0
    %305 = vmatpush2.msra.mxu0 0.0
    %306 = vmatprep.subr.mxu0 0.0
    %307 = vmatpush2.msra.mxu0 0.0
    %308 = vmatprep.subr.mxu0 0.0
    %309 = vmatpush2.msra.mxu0 0.0
    %310 = vmatprep.subr.mxu0 0.0
    %311 = vmatpush2.msra.mxu0 0.0
    %312 = vmatprep.subr.mxu0 0.0
    %313 = vmatpush2.msra.mxu0 0.0
    %314 = vmatprep.subr.mxu0 0.0
    %315 = vmatpush2.msra.mxu0 0.0
    %316 = vmatprep.subr.mxu0 0.0
    %317 = vmatpush2.msra.mxu0 0.0
    %318 = vmatprep.subr.mxu0 0.0
    %319 = vmatpush2.msra.mxu0 0.0
    %320 = vmatprep.subr.mxu0 0.0
    %321 = vmatpush2.msra.mxu0 0.0
    %322 = vmatprep.mubr.f32.mxu0 0.0
    %323 = vmatmul.mubr.f32.gmra.mxu0 %v253
    %v324 = vpop.f32.mrf.mxu0
    %v325 = vadd.f32 0.0, %v324
    %v326 = vpop.f32.mrf.mxu0
    %327 = vmatprep.mubr.f32.mxu0 0.0
    %328 = vmatmul.mubr.f32.gmra.mxu0 %v256
    %v329 = vpop.f32.mrf.mxu0
    %v330 = vadd.f32 0.0, %v329
    %v331 = vpop.f32.mrf.mxu0
    %332 = vdwg.mxu0
    // Predicated region
    $region26: #{tpu_custom_call.1} parent=1 // pred_check
      %p333 = pneg %p21
    $region27: #{tpu_custom_call.1} parent=1 // pred_check_branch
      %335 = sbr.rel (%p333) target = $region29
    $region28: #{tpu_custom_call.1} parent=1 // pred_region
      %336 = vst.msk [vmem:[#allocation3] sm:$0xff] %vm62, %v325
      %337 = vst.msk [vmem:[#allocation3 + $0x8] sm:$0xff] %vm62, %v330
    $region29: #{tpu_custom_call.1} parent=1 // pred_fallthru
      _
    %p338 = scmp.gt.s32.totalorder 0, 0
    // Predicated region
    $region30: #{tpu_custom_call.1} parent=1 // pred_check
      %p339 = pneg %p338
    $region31: #{tpu_custom_call.1} parent=1 // pred_check_branch
      %341 = sbr.rel (%p339) target = $region33
    $region32: #{tpu_custom_call.1} parent=1 // pred_region
      %v342 = vld [vmem:[#allocation3] sm:$0xff]
      %v343 = vld [vmem:[#allocation3 + $0x8] sm:$0xff]
      %v344 = vadd.f32 %v342, %v325
      %v345 = vadd.f32 %v343, %v330
      %346 = vst.msk [vmem:[#allocation3] sm:$0xff] %vm62, %v344
      %347 = vst.msk [vmem:[#allocation3 + $0x8] sm:$0xff] %vm62, %v345
    $region33: #{tpu_custom_call.1} parent=1 // pred_fallthru
      _
    // Predicated region
    $region34: #{tpu_custom_call.1} parent=1 // pred_check
      %p348 = pneg %p21
    $region35: #{tpu_custom_call.1} parent=1 // pred_check_branch
      %350 = sbr.rel (%p348) target = $region37
    $region36: #{tpu_custom_call.1} parent=1 // pred_region
      %v351 = vld [vmem:[%s0] sm:$0xff]
      %v352 = vld [vmem:[%s0 + $0x8] sm:$0xff]
      %v353 = vld [vmem:[#allocation3] sm:$0xff]
      %v354 = vld [vmem:[#allocation3 + $0x8] sm:$0xff]
      %v355 = vadd.f32 %v351, %v353
      %v356 = vadd.f32 %v352, %v354
      %357 = vst.msk [vmem:[#allocation4] sm:$0xff] %vm62, %v355
      %358 = vst.msk [vmem:[#allocation4 + $0x8] sm:$0xff] %vm62, %v356
    $region37: #{tpu_custom_call.1} parent=1 // pred_fallthru
      _
    // Predicated region
    $region38: #{tpu_custom_call.1} parent=1 // pred_check
      _
    $region39: #{tpu_custom_call.1} parent=1 // pred_check_branch
      %360 = sbr.rel (0) target = $region41
    $region40: #{tpu_custom_call.1} parent=1 // pred_region
      %s362 = ssub.s32 256, 256
      %363 = vsyncadd [#allocation5], %s362
      %s364 = sshll.u32 [#allocation4], 4
      %s365 = int_to_ptr.vmem [resolvable:$true] %s364
      %370 = dma.vmem_to_hbm [thread:$0]  %s365, 256, %s5, [#allocation5], 128, 128, 8
    $region41: #{tpu_custom_call.1} parent=1 // pred_fallthru
      _
    // Predicated region
    $region42: #{tpu_custom_call.1} parent=1 // pred_check
      _
    $region43: #{tpu_custom_call.1} parent=1 // pred_check_branch
      %372 = sbr.rel (0) target = $region45
    $region44: #{tpu_custom_call.1} parent=1 // pred_region
      %373 = dma.done [#allocation5], 256
    $region45: #{tpu_custom_call.1} parent=1 // pred_fallthru
      _
    %374 = vsyncpa [#allocation5], 1

</llo_original>
